<compile_context>
chip_gen: v7x
topology: tpu7x:2x2x1
jax: 0.10.0
libtpu: 0.0.40
codegen_flags: <defaults>
</compile_context>

<pallas_src>
import functools

import jax
import jax.numpy as jnp
from jax import lax
from jax.experimental import pallas as pl
from jax.experimental.pallas import tpu as pltpu


def _gated_residual_kernel(x_ref, wfg_ref, bfg_ref, w1_ref, b1_ref, res_ref,
                           halo_ref, *, kernel_size, dilation, t_block, c_out):
    # x_ref   : (1, C_in, T_blk)           current tile of x (NCT layout)
    # wfg_ref : (K, 2*C_out, C_in)         conv_f|conv_g stacked per tap
    # bfg_ref : (2*C_out, 1)
    # w1_ref  : (C_out, C_out)             1x1 conv
    # b1_ref  : (C_out, 1)
    # res_ref : (1, C_out, T_blk)
    # halo_ref: (C_in, max(pad,1)) VMEM    causal halo carried across T tiles
    pad = (kernel_size - 1) * dilation
    x_blk = x_ref[0]                                     # (C_in, T_blk) f32

    if pad > 0:
        t_idx = pl.program_id(1)

        @pl.when(t_idx == 0)
        def _():
            # causal left-pad: halo entering the first tile is zeros
            halo_ref[...] = jnp.zeros_like(halo_ref)

        x_ext = jnp.concatenate([halo_ref[...], x_blk], axis=1)  # (C_in, pad+T_blk)
        # carry the last `pad` columns of this tile as the next tile's halo
        halo_ref[...] = x_blk[:, t_block - pad:]
    else:
        x_ext = x_blk

    # Dilated causal conv with f and g fused along the output-channel axis:
    # one (2*C_out, C_in) @ (C_in, T_blk) matmul per tap (K is small & static).
    acc = jnp.zeros((2 * c_out, t_block), dtype=jnp.float32)
    for k in range(kernel_size):
        xs = x_ext[:, k * dilation: k * dilation + t_block]      # (C_in, T_blk)
        acc = acc + jnp.dot(wfg_ref[k], xs,
                            preferred_element_type=jnp.float32)
    acc = acc + bfg_ref[...]                                     # (2*C_out, T_blk)

    f = acc[:c_out]
    g = acc[c_out:]
    gated = f * jax.nn.sigmoid(g)                                # exp -> EUP

    skip = jnp.dot(w1_ref[...], gated,
                   preferred_element_type=jnp.float32) + b1_ref[...]
    res_ref[0] = (skip + x_blk).astype(res_ref.dtype)            # residual


def gated_residual_block(x, params, *, kernel_size, dilation, output_width,
                         t_block=None):
    """x: (N, C, T) float32, PyTorch NCT layout.

    params (PyTorch-shaped):
      wf, wg : (C_out, C_in, K)   conv_f / conv_g weights
      bf, bg : (C_out,)           conv_f / conv_g biases
      w1     : (C_out, C_out, 1)  1x1 conv weight
      b1     : (C_out,)           1x1 conv bias

    Returns (residual (N, C_out, T), skip (N, C_out, output_width)) in NCT.
    """
    wf, bf, wg, bg, w1, b1 = params
    N, C_in, T = x.shape
    C_out = wf.shape[0]
    assert C_in == C_out, "residual add requires in_channels == out_channels"
    assert 0 < output_width <= T
    pad = (kernel_size - 1) * dilation

    # --- pick the T tile: largest that keeps VMEM modest (fits v7x's smaller
    # VMEM too); block last dims must be (mult of 8, mult of 128) or full. ---
    if t_block is None:
        if T % 128 != 0:
            t_block = T                       # small-T path: single tile
        else:
            # ~16 MiB of live f32 per step (x tile, fused acc, gated, skip,
            # residual, x2 pipeline buffers).
            per_col = C_in * 4 * 12
            t_block = max(128, min(T, ((16 << 20) // per_col) // 128 * 128))
            while T % t_block != 0:
                t_block -= 128
    if t_block != T:
        assert t_block % 128 == 0, "partial T tiles must be a multiple of 128"
    assert T % t_block == 0
    assert t_block >= max(pad, 1), "T tile must cover the dilated-conv halo"
    n_t = T // t_block

    # --- pack weights: stack f|g along the output-channel axis so each tap is
    # a single matmul; (K, 2*C_out, C_in) weights, (2*C_out, 1) bias. ---
    w_fg = jnp.concatenate([jnp.transpose(wf, (2, 0, 1)),
                            jnp.transpose(wg, (2, 0, 1))], axis=1)
    b_fg = jnp.concatenate([bf, bg])[:, None]
    w1_2d = w1[:, :, 0]
    b1_2d = b1[:, None]

    kernel = functools.partial(_gated_residual_kernel,
                               kernel_size=kernel_size, dilation=dilation,
                               t_block=t_block, c_out=C_out)

    residual = pl.pallas_call(
        kernel,
        out_shape=jax.ShapeDtypeStruct((N, C_out, T), jnp.float32),
        grid_spec=pltpu.PrefetchScalarGridSpec(
            num_scalar_prefetch=0,
            grid=(N, n_t),                    # T innermost: halo carry is sequential
            in_specs=[
                pl.BlockSpec((1, C_in, t_block), lambda n, t: (n, 0, t)),
                pl.BlockSpec((kernel_size, 2 * C_out, C_in), lambda n, t: (0, 0, 0)),
                pl.BlockSpec((2 * C_out, 1), lambda n, t: (0, 0)),
                pl.BlockSpec((C_out, C_out), lambda n, t: (0, 0)),
                pl.BlockSpec((C_out, 1), lambda n, t: (0, 0)),
            ],
            out_specs=pl.BlockSpec((1, C_out, t_block), lambda n, t: (n, 0, t)),
            scratch_shapes=[pltpu.VMEM((C_in, max(pad, 1)), jnp.float32)],
        ),
        compiler_params=pltpu.CompilerParams(
            dimension_semantics=("parallel", "arbitrary")),
    )(x, w_fg, b_fg, w1_2d, b1_2d)

    # skip = conv_1x1(gated) = residual - x; slice the last `output_width`
    # steps outside the kernel (drops a second output stream / unaligned store).
    skip = residual[:, :, T - output_width:] - x[:, :, T - output_width:]
    return residual, skip


def _reference(x, params, *, kernel_size, dilation, output_width):
    """Pure-JAX reference mirroring the PyTorch module."""
    wf, bf, wg, bg, w1, b1 = params
    pad = (kernel_size - 1) * dilation
    xp = jnp.pad(x, ((0, 0), (0, 0), (pad, 0)))
    dn = ('NCH', 'OIH', 'NCH')
    hp = lax.Precision.HIGHEST
    f = lax.conv_general_dilated(xp, wf, (1,), 'VALID', rhs_dilation=(dilation,),
                                 dimension_numbers=dn, precision=hp) + bf[None, :, None]
    g = lax.conv_general_dilated(xp, wg, (1,), 'VALID', rhs_dilation=(dilation,),
                                 dimension_numbers=dn, precision=hp) + bg[None, :, None]
    gated = f * jax.nn.sigmoid(g)
    skip = lax.conv_general_dilated(gated, w1, (1,), 'VALID',
                                    dimension_numbers=dn, precision=hp) + b1[None, :, None]
    residual = skip + x
    T = x.shape[-1]
    return residual, skip[:, :, T - output_width:]


if __name__ == "__main__":
    def run_case(N, C, T, K, DIL, W, t_block=None):
        key = jax.random.PRNGKey(0)
        k1, k2, k3, k4, k5, k6, kx = jax.random.split(key, 7)
        s = 0.5
        wf = s * jax.random.normal(k1, (C, C, K), jnp.float32)   # conv_f weight (PyTorch shape)
        bf = s * jax.random.normal(k2, (C,), jnp.float32)
        wg = s * jax.random.normal(k3, (C, C, K), jnp.float32)   # conv_g weight
        bg = s * jax.random.normal(k4, (C,), jnp.float32)
        w1 = s * jax.random.normal(k5, (C, C, 1), jnp.float32)   # 1x1 conv weight
        b1 = s * jax.random.normal(k6, (C,), jnp.float32)
        params = (wf, bf, wg, bg, w1, b1)
        x = jax.random.normal(kx, (N, C, T), jnp.float32)        # NCT like PyTorch

        res, skip = gated_residual_block(x, params, kernel_size=K, dilation=DIL,
                                         output_width=W, t_block=t_block)
        jax.block_until_ready((res, skip))

        res_ref, skip_ref = _reference(x, params, kernel_size=K, dilation=DIL,
                                       output_width=W)
        assert res.shape == (N, C, T) and skip.shape == (N, C, W)
        assert jnp.allclose(res, res_ref, atol=1e-4, rtol=1e-4), "residual mismatch"
        assert jnp.allclose(skip, skip_ref, atol=1e-4, rtol=1e-4), "skip mismatch"

    # Small shapes matching the PyTorch module (single T tile).
    run_case(N=2, C=4, T=16, K=2, DIL=2, W=8)
    # Multi-tile path: T tiled in blocks of 128 with the causal halo carried.
    run_case(N=2, C=8, T=256, K=2, DIL=4, W=100, t_block=128)

    print("KERNEL_OK")
</pallas_src>

<mosaic_0001>
module attributes {stable_mosaic.version = 11 : i64} {
  func.func @_gated_residual_kernel(%arg0: i32, %arg1: i32, %arg2: memref<1x4x16xf32, #tpu.memory_space<vmem>>, %arg3: memref<2x8x4xf32, #tpu.memory_space<vmem>>, %arg4: memref<8x1xf32, #tpu.memory_space<vmem>>, %arg5: memref<4x4xf32, #tpu.memory_space<vmem>>, %arg6: memref<4x1xf32, #tpu.memory_space<vmem>>, %arg7: memref<1x4x16xf32, #tpu.memory_space<vmem>>, %arg8: memref<4x2xf32, #tpu.memory_space<vmem>>) attributes {dimension_semantics = [#tpu.dimension_semantics<parallel>, #tpu.dimension_semantics<arbitrary>], iteration_bounds = array<i64: 2, 1>, scalar_prefetch = 0 : i64, scratch_operands = 1 : i64, tpu.core_type = #tpu.core_type<tc>, window_params = [{transform_indices = @transform_0, window_bounds = array<i64: 1, 4, 16>}, {pipeline_mode = #tpu.pipeline_mode<synchronous>, transform_indices = @transform_1, window_bounds = array<i64: 2, 8, 4>}, {pipeline_mode = #tpu.pipeline_mode<synchronous>, transform_indices = @transform_2, window_bounds = array<i64: 8, 1>}, {pipeline_mode = #tpu.pipeline_mode<synchronous>, transform_indices = @transform_3, window_bounds = array<i64: 4, 4>}, {pipeline_mode = #tpu.pipeline_mode<synchronous>, transform_indices = @transform_4, window_bounds = array<i64: 4, 1>}, {transform_indices = @transform_5, window_bounds = array<i64: 1, 4, 16>}]} {
    %c0 = arith.constant 0 : index
    %c0_0 = arith.constant 0 : index
    %c0_1 = arith.constant 0 : index
    %0 = vector.load %arg2[%c0, %c0_0, %c0_1] : memref<1x4x16xf32, #tpu.memory_space<vmem>>, vector<1x4x16xf32>
    %1 = vector.shape_cast %0 : vector<1x4x16xf32> to vector<4x16xf32>
    %c0_i32 = arith.constant 0 : i32
    %2 = arith.cmpi eq, %arg1, %c0_i32 : i32
    %3 = arith.extui %2 : i1 to i32
    %c0_i32_2 = arith.constant 0 : i32
    %4 = arith.cmpi ne, %3, %c0_i32_2 : i32
    scf.if %4 {
      %cst_25 = arith.constant 0.000000e+00 : f32
      %40 = vector.broadcast %cst_25 : f32 to vector<4x2xf32>
      %c0_26 = arith.constant 0 : index
      %c0_27 = arith.constant 0 : index
      %41 = vector.load %arg8[%c0_26, %c0_27] : memref<4x2xf32, #tpu.memory_space<vmem>>, vector<4x2xf32>
      tpu.vector_store %arg8[%c0_26, %c0_27], %40 {strides = array<i32>} : memref<4x2xf32, #tpu.memory_space<vmem>>, vector<4x2xf32>,
    } else {
    }
    %c0_3 = arith.constant 0 : index
    %c0_4 = arith.constant 0 : index
    %5 = vector.load %arg8[%c0_3, %c0_4] : memref<4x2xf32, #tpu.memory_space<vmem>>, vector<4x2xf32>
    %6 = tpu.concatenate %5, %1 in 1 : vector<4x2xf32>, vector<4x16xf32> -> vector<4x18xf32>
    %7 = vector.extract_strided_slice %1 {offsets = [0, 14], sizes = [4, 2], strides = [1, 1]} : vector<4x16xf32> to vector<4x2xf32>
    %c0_5 = arith.constant 0 : index
    %c0_6 = arith.constant 0 : index
    %8 = vector.load %arg8[%c0_5, %c0_6] : memref<4x2xf32, #tpu.memory_space<vmem>>, vector<4x2xf32>
    tpu.vector_store %arg8[%c0_5, %c0_6], %7 {strides = array<i32>} : memref<4x2xf32, #tpu.memory_space<vmem>>, vector<4x2xf32>,
    %cst = arith.constant 0.000000e+00 : f32
    %9 = vector.broadcast %cst : f32 to vector<8x16xf32>
    %10 = vector.extract_strided_slice %6 {offsets = [0, 0], sizes = [4, 16], strides = [1, 1]} : vector<4x18xf32> to vector<4x16xf32>
    %c0_7 = arith.constant 0 : index
    %c0_8 = arith.constant 0 : index
    %c0_9 = arith.constant 0 : index
    %11 = vector.load %arg3[%c0_7, %c0_8, %c0_9] : memref<2x8x4xf32, #tpu.memory_space<vmem>>, vector<1x8x4xf32>
    %12 = vector.shape_cast %11 : vector<1x8x4xf32> to vector<8x4xf32>
    %cst_10 = arith.constant dense<0.000000e+00> : vector<8x16xf32>
    %13 = tpu.matmul %12, %10, %cst_10 {dimension_numbers = #tpu.dot_dimension_numbers<[1], [0], [0], [1], [0, 0, 1, 1], [], []>} : vector<8x4xf32>, vector<4x16xf32>, vector<8x16xf32> -> vector<8x16xf32>
    %14 = arith.addf %9, %13 : vector<8x16xf32>
    %15 = vector.extract_strided_slice %6 {offsets = [0, 2], sizes = [4, 16], strides = [1, 1]} : vector<4x18xf32> to vector<4x16xf32>
    %c1 = arith.constant 1 : index
    %c0_11 = arith.constant 0 : index
    %c0_12 = arith.constant 0 : index
    %16 = vector.load %arg3[%c1, %c0_11, %c0_12] : memref<2x8x4xf32, #tpu.memory_space<vmem>>, vector<1x8x4xf32>
    %17 = vector.shape_cast %16 : vector<1x8x4xf32> to vector<8x4xf32>
    %cst_13 = arith.constant dense<0.000000e+00> : vector<8x16xf32>
    %18 = tpu.matmul %17, %15, %cst_13 {dimension_numbers = #tpu.dot_dimension_numbers<[1], [0], [0], [1], [0, 0, 1, 1], [], []>} : vector<8x4xf32>, vector<4x16xf32>, vector<8x16xf32> -> vector<8x16xf32>
    %19 = arith.addf %14, %18 : vector<8x16xf32>
    %c0_14 = arith.constant 0 : index
    %c0_15 = arith.constant 0 : index
    %20 = vector.load %arg4[%c0_14, %c0_15] : memref<8x1xf32, #tpu.memory_space<vmem>>, vector<8x1xf32>
    %21 = vector.broadcast %20 : vector<8x1xf32> to vector<8x16xf32>
    %22 = arith.addf %19, %21 : vector<8x16xf32>
    %23 = vector.extract_strided_slice %22 {offsets = [0, 0], sizes = [4, 16], strides = [1, 1]} : vector<8x16xf32> to vector<4x16xf32>
    %24 = vector.extract_strided_slice %22 {offsets = [4, 0], sizes = [4, 16], strides = [1, 1]} : vector<8x16xf32> to vector<4x16xf32>
    %25 = arith.negf %24 : vector<4x16xf32>
    %26 = math.exp %25 : vector<4x16xf32>
    %cst_16 = arith.constant 1.000000e+00 : f32
    %27 = vector.broadcast %cst_16 : f32 to vector<4x16xf32>
    %28 = arith.addf %27, %26 : vector<4x16xf32>
    %29 = arith.divf %27, %28 : vector<4x16xf32>
    %30 = arith.mulf %23, %29 : vector<4x16xf32>
    %c0_17 = arith.constant 0 : index
    %c0_18 = arith.constant 0 : index
    %31 = vector.load %arg5[%c0_17, %c0_18] : memref<4x4xf32, #tpu.memory_space<vmem>>, vector<4x4xf32>
    %cst_19 = arith.constant dense<0.000000e+00> : vector<4x16xf32>
    %32 = tpu.matmul %31, %30, %cst_19 {dimension_numbers = #tpu.dot_dimension_numbers<[1], [0], [0], [1], [0, 0, 1, 1], [], []>} : vector<4x4xf32>, vector<4x16xf32>, vector<4x16xf32> -> vector<4x16xf32>
    %c0_20 = arith.constant 0 : index
    %c0_21 = arith.constant 0 : index
    %33 = vector.load %arg6[%c0_20, %c0_21] : memref<4x1xf32, #tpu.memory_space<vmem>>, vector<4x1xf32>
    %34 = vector.broadcast %33 : vector<4x1xf32> to vector<4x16xf32>
    %35 = arith.addf %32, %34 : vector<4x16xf32>
    %36 = arith.addf %35, %1 : vector<4x16xf32>
    %c0_22 = arith.constant 0 : index
    %c0_23 = arith.constant 0 : index
    %c0_24 = arith.constant 0 : index
    %37 = vector.load %arg7[%c0_22, %c0_23, %c0_24] : memref<1x4x16xf32, #tpu.memory_space<vmem>>, vector<1x4x16xf32>
    %38 = vector.shape_cast %37 : vector<1x4x16xf32> to vector<4x16xf32>
    %39 = vector.shape_cast %36 : vector<4x16xf32> to vector<1x4x16xf32>
    tpu.vector_store %arg7[%c0_22, %c0_23, %c0_24], %39 {strides = array<i32>} : memref<1x4x16xf32, #tpu.memory_space<vmem>>, vector<1x4x16xf32>,
    return
  }
  func.func @transform_0(%arg0: i32, %arg1: i32) -> (i32, i32, i32) {
    %c0_i32 = arith.constant 0 : i32
    %c0_i32_0 = arith.constant 0 : i32
    return %arg0, %c0_i32, %arg1 : i32, i32, i32
  }
  func.func @transform_1(%arg0: i32, %arg1: i32) -> (i32, i32, i32) {
    %c0_i32 = arith.constant 0 : i32
    %c0_i32_0 = arith.constant 0 : i32
    %c0_i32_1 = arith.constant 0 : i32
    %c0_i32_2 = arith.constant 0 : i32
    return %c0_i32, %c0_i32_0, %c0_i32_1 : i32, i32, i32
  }
  func.func @transform_2(%arg0: i32, %arg1: i32) -> (i32, i32) {
    %c0_i32 = arith.constant 0 : i32
    %c0_i32_0 = arith.constant 0 : i32
    %c0_i32_1 = arith.constant 0 : i32
    return %c0_i32, %c0_i32_0 : i32, i32
  }
  func.func @transform_3(%arg0: i32, %arg1: i32) -> (i32, i32) {
    %c0_i32 = arith.constant 0 : i32
    %c0_i32_0 = arith.constant 0 : i32
    %c0_i32_1 = arith.constant 0 : i32
    return %c0_i32, %c0_i32_0 : i32, i32
  }
  func.func @transform_4(%arg0: i32, %arg1: i32) -> (i32, i32) {
    %c0_i32 = arith.constant 0 : i32
    %c0_i32_0 = arith.constant 0 : i32
    %c0_i32_1 = arith.constant 0 : i32
    return %c0_i32, %c0_i32_0 : i32, i32
  }
  func.func @transform_5(%arg0: i32, %arg1: i32) -> (i32, i32, i32) {
    %c0_i32 = arith.constant 0 : i32
    %c0_i32_0 = arith.constant 0 : i32
    return %arg0, %c0_i32, %arg1 : i32, i32, i32
  }
}

</mosaic_0001>

<llo_original>
// kernel: tpu_custom_call.1
$region0: #{tpu_custom_call.1}
  #allocation0 [shape = 'u32[]', space=smem, size = 0x4, offset = 0x4, fixed_abs, tag = 'smem constant byte address 0x4 - core index']
  #allocation1 [shape = 'u32[144,128]{1,0:T(1,128)}', space=vmem, size = 0x12000, scoped, tag = 'internal scratch']
  #allocation2 [shape = 'f32[4,2]{1,0:T(4,128)}', space=vmem, size = 0x800, scoped, tag = 'scratch operand']
  %s0 = inlined_call_operand.vmem [shape: f32[2,4,16], index: 0, kind: input, shape index: {}]
  %s1 = inlined_call_operand.vmem [shape: f32[2,8,4], index: 1, kind: input, shape index: {}]
  %s2 = inlined_call_operand.vmem [shape: f32[8,1], index: 2, kind: input, shape index: {}]
  %s3 = inlined_call_operand.vmem [shape: f32[4,4], index: 3, kind: input, shape index: {}]
  %s4 = inlined_call_operand.vmem [shape: f32[4,1], index: 4, kind: input, shape index: {}]
  %s5 = inlined_call_operand.hbm [shape: f32[2,4,16], index: 5, kind: output, shape index: {}]
  %s6 = sld [smem:[#allocation0]]
  $region57: #{tpu_custom_call.1} parent=0
    _
  %s8 = ssub.s32 1, %s6
  %s9 = scalar_select 0, %s8, %s6
  $region1: #{tpu_custom_call.1} parent=0
    #allocation3 [shape = 'u8[4096]{0}', space=vmem, size = 0x1000, scoped, tag = 'output window, operand 0']
    #allocation4 [shape = 's32[2]{0}', space=sflag, size = 0x8, scoped, tag = 'scoped memory for tpu_custom_call.1']
    %10 = vsyncpa [#allocation4], 0
    %s11 = scalar_lea.sflag [#allocation4], 1
    %12 = vsyncpa %s11, 0
    loop: start=0, step=1, limit=4
    $region2: #{tpu_custom_call.1} parent=1 // loop_pre_header
      _
    $region3: #{tpu_custom_call.1} parent=1 // loop_header
      %s14 = sphi 0, %s18
      %p15 = scmp.ge.s32.totalorder %s14, 4
      %s21 = sphi 0, %s33
      %s22 = sphi 0, %s29
      %s23 = sphi 0, %s21
      %s24 = sphi 0, %s22
      %s25 = sphi 0, %s23
      %s26 = sphi 0, %s24
      %s38 = sphi 0, %s40
      %s41 = sphi 0, %s38
      %s42 = sphi 0, %s41
      %s58 = sphi 0, %s42
      %s62 = sphi 0, %s62
      %s64 = sphi 0, %s62
      %s65 = sphi 0, %s64
      %s79 = sphi 0, %s65
      %s83 = sphi 0, %s83
      %s85 = sphi 0, %s83
      %s86 = sphi 0, %s85
      %s100 = sphi 0, %s86
      %s104 = sphi 0, %s104
      %s106 = sphi 0, %s104
      %s107 = sphi 0, %s106
      %s121 = sphi 0, %s107
      %s125 = sphi 0, %s125
      %s127 = sphi 0, %s125
      %s128 = sphi 0, %s127
      %s142 = sphi 0, %s128
      %s150 = sphi 0, %s152
      %s153 = sphi 0, %s150
      %s154 = sphi 0, %s153
      %s170 = sphi 0, %s154
    $region4: #{tpu_custom_call.1} parent=1 // loop_header_branch
      %17 = sbr.rel (%p15) target = $region8
    $region5: #{tpu_custom_call.1} parent=1 // loop_body
      %s19 = ssub.s32 %s14, 1
      %s20 = ssub.s32 %s14, 2
      %s27 = sadd.s32 1, %s22
      %p28 = scmp.ge.s32.totalorder %s27, 1
      %s29 = scalar_select %p28, 0, %s27
      %s30 = sadd.s32 1, %s21
      %s31 = scalar_select %p28, %s30, %s21
      %p32 = scmp.ge.s32.totalorder %s31, 2
      %s33 = scalar_select %p32, 0, %s31
      %s34 = ssub.s32 %s21, %s33
      %s35 = ssub.s32 %s22, %s29
      %s36 = sor.u32 %s34, %s35
      %p37 = scmp.eq.s32.totalorder %s36, 0
      %s39 = sadd.s32 %s38, 1
      %s40 = scalar_select %p37, %s38, %s39
      %p43 = pneg %p37
      %p44 = scmp.eq.s32.totalorder %s14, 1
      %p45 = por %p43, %p44
      %p46 = scmp.ne.s32.totalorder %s38, %s41
      %p47 = scmp.eq.s32.totalorder %s14, 0
      %p48 = por %p46, %p47
      %p49 = scmp.ne.s32.totalorder %s38, %s41
      %p50 = scmp.eq.s32.totalorder %s19, 1
      %p51 = por %p49, %p50
      %p52 = scmp.ne.s32.totalorder %s41, %s42
      %p53 = scmp.eq.s32.totalorder %s19, 0
      %p54 = por %p52, %p53
      %p55 = scmp.ne.s32.totalorder %s41, %s42
      %p56 = scmp.eq.s32.totalorder %s20, 1
      %p57 = por %p55, %p56
      %p59 = scmp.ne.s32.totalorder %s42, %s58
      %p60 = scmp.eq.s32.totalorder %s20, 0
      %p61 = por %p59, %p60
      %s63 = sadd.s32 %s62, 1
      %p66 = scmp.eq.s32.totalorder %s14, 1
      %p67 = scmp.ne.s32.totalorder %s62, %s64
      %p68 = scmp.eq.s32.totalorder %s14, 0
      %p69 = por %p67, %p68
      %p70 = scmp.ne.s32.totalorder %s62, %s64
      %p71 = scmp.eq.s32.totalorder %s19, 1
      %p72 = por %p70, %p71
      %p73 = scmp.ne.s32.totalorder %s64, %s65
      %p74 = scmp.eq.s32.totalorder %s19, 0
      %p75 = por %p73, %p74
      %p76 = scmp.ne.s32.totalorder %s64, %s65
      %p77 = scmp.eq.s32.totalorder %s20, 1
      %p78 = por %p76, %p77
      %p80 = scmp.ne.s32.totalorder %s65, %s79
      %p81 = scmp.eq.s32.totalorder %s20, 0
      %p82 = por %p80, %p81
      %s84 = sadd.s32 %s83, 1
      %p87 = scmp.eq.s32.totalorder %s14, 1
      %p88 = scmp.ne.s32.totalorder %s83, %s85
      %p89 = scmp.eq.s32.totalorder %s14, 0
      %p90 = por %p88, %p89
      %p91 = scmp.ne.s32.totalorder %s83, %s85
      %p92 = scmp.eq.s32.totalorder %s19, 1
      %p93 = por %p91, %p92
      %p94 = scmp.ne.s32.totalorder %s85, %s86
      %p95 = scmp.eq.s32.totalorder %s19, 0
      %p96 = por %p94, %p95
      %p97 = scmp.ne.s32.totalorder %s85, %s86
      %p98 = scmp.eq.s32.totalorder %s20, 1
      %p99 = por %p97, %p98
      %p101 = scmp.ne.s32.totalorder %s86, %s100
      %p102 = scmp.eq.s32.totalorder %s20, 0
      %p103 = por %p101, %p102
      %s105 = sadd.s32 %s104, 1
      %p108 = scmp.eq.s32.totalorder %s14, 1
      %p109 = scmp.ne.s32.totalorder %s104, %s106
      %p110 = scmp.eq.s32.totalorder %s14, 0
      %p111 = por %p109, %p110
      %p112 = scmp.ne.s32.totalorder %s104, %s106
      %p113 = scmp.eq.s32.totalorder %s19, 1
      %p114 = por %p112, %p113
      %p115 = scmp.ne.s32.totalorder %s106, %s107
      %p116 = scmp.eq.s32.totalorder %s19, 0
      %p117 = por %p115, %p116
      %p118 = scmp.ne.s32.totalorder %s106, %s107
      %p119 = scmp.eq.s32.totalorder %s20, 1
      %p120 = por %p118, %p119
      %p122 = scmp.ne.s32.totalorder %s107, %s121
      %p123 = scmp.eq.s32.totalorder %s20, 0
      %p124 = por %p122, %p123
      %s126 = sadd.s32 %s125, 1
      %p129 = scmp.eq.s32.totalorder %s14, 1
      %p130 = scmp.ne.s32.totalorder %s125, %s127
      %p131 = scmp.eq.s32.totalorder %s14, 0
      %p132 = por %p130, %p131
      %p133 = scmp.ne.s32.totalorder %s125, %s127
      %p134 = scmp.eq.s32.totalorder %s19, 1
      %p135 = por %p133, %p134
      %p136 = scmp.ne.s32.totalorder %s127, %s128
      %p137 = scmp.eq.s32.totalorder %s19, 0
      %p138 = por %p136, %p137
      %p139 = scmp.ne.s32.totalorder %s127, %s128
      %p140 = scmp.eq.s32.totalorder %s20, 1
      %p141 = por %p139, %p140
      %p143 = scmp.ne.s32.totalorder %s128, %s142
      %p144 = scmp.eq.s32.totalorder %s20, 0
      %p145 = por %p143, %p144
      %s146 = ssub.s32 %s21, %s33
      %s147 = ssub.s32 %s22, %s29
      %s148 = sor.u32 %s146, %s147
      %p149 = scmp.eq.s32.totalorder %s148, 0
      %s151 = sadd.s32 %s150, 1
      %s152 = scalar_select %p149, %s150, %s151
      %p155 = pneg %p149
      %p156 = scmp.eq.s32.totalorder %s14, 1
      %p157 = por %p155, %p156
      %p158 = scmp.ne.s32.totalorder %s150, %s153
      %p159 = scmp.eq.s32.totalorder %s14, 0
      %p160 = por %p158, %p159
      %p161 = scmp.ne.s32.totalorder %s150, %s153
      %p162 = scmp.eq.s32.totalorder %s19, 1
      %p163 = por %p161, %p162
      %p164 = scmp.ne.s32.totalorder %s153, %s154
      %p165 = scmp.eq.s32.totalorder %s19, 0
      %p166 = por %p164, %p165
      %p167 = scmp.ne.s32.totalorder %s153, %s154
      %p168 = scmp.eq.s32.totalorder %s20, 1
      %p169 = por %p167, %p168
      %p171 = scmp.ne.s32.totalorder %s154, %s170
      %p172 = scmp.eq.s32.totalorder %s20, 0
      %p173 = por %p171, %p172
      %p174 = scmp.le.s32.totalorder 1, %s14
      %p175 = scmp.lt.s32.totalorder %s14, 3
      %p176 = pnand %p174, %p175
      %p177 = pneg %p176
      // Predicated region
      $region9: #{tpu_custom_call.1} parent=5 // pred_check
        _
      $region10: #{tpu_custom_call.1} parent=5 // pred_check_branch
        %179 = sbr.rel (%p176) target = $region12
      $region11: #{tpu_custom_call.1} parent=5 // pred_region
        %s180 = ssub.s32 %s14, 1
        // Predicated region
        $region13: #{tpu_custom_call.1} parent=11 // pred_check
          %p181 = pneg %p75
        $region14: #{tpu_custom_call.1} parent=11 // pred_check_branch
          %183 = sbr.rel (%p181) target = $region16
        $region15: #{tpu_custom_call.1} parent=11 // pred_region
          _
        $region16: #{tpu_custom_call.1} parent=11 // pred_fallthru
          _
        // Predicated region
        $region17: #{tpu_custom_call.1} parent=11 // pred_check
          %p184 = pneg %p96
        $region18: #{tpu_custom_call.1} parent=11 // pred_check_branch
          %186 = sbr.rel (%p184) target = $region20
        $region19: #{tpu_custom_call.1} parent=11 // pred_region
          _
        $region20: #{tpu_custom_call.1} parent=11 // pred_fallthru
          _
        // Predicated region
        $region21: #{tpu_custom_call.1} parent=11 // pred_check
          %p187 = pneg %p117
        $region22: #{tpu_custom_call.1} parent=11 // pred_check_branch
          %189 = sbr.rel (%p187) target = $region24
        $region23: #{tpu_custom_call.1} parent=11 // pred_region
          _
        $region24: #{tpu_custom_call.1} parent=11 // pred_fallthru
          _
        // Predicated region
        $region25: #{tpu_custom_call.1} parent=11 // pred_check
          %p190 = pneg %p138
        $region26: #{tpu_custom_call.1} parent=11 // pred_check_branch
          %192 = sbr.rel (%p190) target = $region28
        $region27: #{tpu_custom_call.1} parent=11 // pred_region
          _
        $region28: #{tpu_custom_call.1} parent=11 // pred_fallthru
          _
      $region12: #{tpu_custom_call.1} parent=5 // pred_fallthru
        _
      %p193 = scmp.lt.s32.totalorder %s14, 2
      // Predicated region
      $region29: #{tpu_custom_call.1} parent=5 // pred_check
        %p194 = pneg %p193
      $region30: #{tpu_custom_call.1} parent=5 // pred_check_branch
        %196 = sbr.rel (%p194) target = $region32
      $region31: #{tpu_custom_call.1} parent=5 // pred_region
        // Predicated region
        $region33: #{tpu_custom_call.1} parent=31 // pred_check
          %p197 = pneg %p48
        $region34: #{tpu_custom_call.1} parent=31 // pred_check_branch
          %199 = sbr.rel (%p197) target = $region36
        $region35: #{tpu_custom_call.1} parent=31 // pred_region
          %p200 = scmp.lt.s32.totalorder %s21, 1
          %s201 = scalar_select %p200, %s21, 1
          %p202 = scmp.lt.s32.totalorder %s22, 0
          %s203 = scalar_select %p202, %s22, 0
          %s204 = sadd.s32 %s203, %s201
          %s205 = smul.addr %s204, 4
          %s206 = scalar_lea.vmem %s0, %s205
        $region36: #{tpu_custom_call.1} parent=31 // pred_fallthru
          _
      $region32: #{tpu_custom_call.1} parent=5 // pred_fallthru
        _
      %p207 = scmp.le.s32.totalorder 1, %s14
      %p208 = scmp.lt.s32.totalorder %s14, 3
      %p209 = pnand %p207, %p208
      %p210 = pneg %p209
      // Predicated region
      $region37: #{tpu_custom_call.1} parent=5 // pred_check
        _
      $region38: #{tpu_custom_call.1} parent=5 // pred_check_branch
        %212 = sbr.rel (%p209) target = $region40
      $region39: #{tpu_custom_call.1} parent=5 // pred_region
        %s213 = ssub.s32 %s14, 1
        %p214 = scmp.lt.s32.totalorder %s23, 1
        %s215 = scalar_select %p214, %s23, 1
        %p216 = scmp.lt.s32.totalorder %s24, 0
        %s217 = scalar_select %p216, %s24, 0
        %s218 = sadd.s32 %s217, %s215
        %s219 = smul.addr %s218, 4
        %s220 = scalar_lea.vmem %s0, %s219
        %p221 = pneg %p54
        %p222 = pneg %p51
        %p223 = pneg %p75
        %p224 = pneg %p72
        %p225 = pneg %p96
        %p226 = pneg %p93
        %p227 = pneg %p117
        %p228 = pneg %p114
        %p229 = pneg %p138
        %p230 = pneg %p135
        %p231 = pneg %p166
        %p232 = pneg %p163
        %s233 = sand.u32 %s153, 1
        %s234 = scalar_lea.sflag [#allocation4], %s233
        %s235 = sand.u32 %s153, 1
        %s236 = smul.addr %s235, 4
        %s237 = scalar_lea.vmem [#allocation3], %s236
        %p238 = scmp.lt.s32.totalorder %s23, 1
        %s239 = scalar_select %p238, %s23, 1
        %p240 = scmp.lt.s32.totalorder %s24, 0
        %s241 = scalar_select %p240, %s24, 0
        %s242 = sadd.s32 %s241, %s239
        %s243 = smul.addr %s242, 4
        %s244 = scalar_lea.vmem %s0, %s243
        %v245 = vld [vmem:[%s244] sm:$0xf]
        %p246 = scmp.eq.s32.totalorder %s24, 0
        // Predicated region
        $region41: #{tpu_custom_call.1} parent=39 // pred_check
          %p247 = pneg %p246
        $region42: #{tpu_custom_call.1} parent=39 // pred_check_branch
          %249 = sbr.rel (%p247) target = $region44
        $region43: #{tpu_custom_call.1} parent=39 // pred_region
          %vm250 = vcmask 11264
          %251 = vst.msk [vmem:[#allocation2] sm:$0xf] %vm250, 0.0
        $region44: #{tpu_custom_call.1} parent=39 // pred_fallthru
          _
        %v252 = vld [vmem:[#allocation2] sm:$0xf]
        %254 = vrot.lane.b32.xlu0 %v245, 2
        %v255 = vpop.permute.xlu0 %254
        %vm257 = vcmask 15360
        %v258 = vsel %vm257, %v252, %v255
        %259 = vrot.lane.b32.xlu0 %v245, 114
        %v260 = vpop.permute.xlu0 %259
        %vm262 = vcmask 11264
        %263 = vst.msk [vmem:[#allocation2] sm:$0xf] %vm262, %v260
        %v264 = vld [vmem:[%s1] sm:$0xff]
        %s265 = scalar_lea.vmem %s1, 8
        %v266 = vld [vmem:[%s265] sm:$0xff]
        %268 = vrot.lane.b32.xlu0 %v258, 126
        %v269 = vpop.permute.xlu0 %268
        %vm270 = vcmask 31744
        %v272 = vsel %vm270, %v266, 0
        %vm274 = vcmask 1043456
        %v275 = vsel %vm274, %v269, 0
        %277 = vmatprep.subr.mxu0 0.0
        %278 = vmatpush1.msra.mxu0 %v275
        %279 = vmatprep.subr.mxu0 0.0
        %280 = vmatpush1.msra.mxu0 0.0
        %281 = vmatprep.subr.mxu0 0.0
        %282 = vmatpush1.msra.mxu0 0.0
        %283 = vmatprep.subr.mxu0 0.0
        %284 = vmatpush1.msra.mxu0 0.0
        %285 = vmatprep.subr.mxu0 0.0
        %286 = vmatpush1.msra.mxu0 0.0
        %287 = vmatprep.subr.mxu0 0.0
        %288 = vmatpush1.msra.mxu0 0.0
        %289 = vmatprep.subr.mxu0 0.0
        %290 = vmatpush1.msra.mxu0 0.0
        %291 = vmatprep.subr.mxu0 0.0
        %292 = vmatpush1.msra.mxu0 0.0
        %293 = vmatprep.subr.mxu0 0.0
        %294 = vmatpush1.msra.mxu0 0.0
        %295 = vmatprep.subr.mxu0 0.0
        %296 = vmatpush1.msra.mxu0 0.0
        %297 = vmatprep.subr.mxu0 0.0
        %298 = vmatpush1.msra.mxu0 0.0
        %299 = vmatprep.subr.mxu0 0.0
        %300 = vmatpush1.msra.mxu0 0.0
        %301 = vmatprep.subr.mxu0 0.0
        %302 = vmatpush1.msra.mxu0 0.0
        %303 = vmatprep.subr.mxu0 0.0
        %304 = vmatpush1.msra.mxu0 0.0
        %305 = vmatprep.subr.mxu0 0.0
        %306 = vmatpush1.msra.mxu0 0.0
        %307 = vmatprep.subr.mxu0 0.0
        %308 = vmatpush1.msra.mxu0 0.0
        %309 = vmatprep.subr.mxu0 0.0
        %310 = vmatpush1.msra.mxu0 0.0
        %311 = vmatprep.subr.mxu0 0.0
        %312 = vmatpush1.msra.mxu0 0.0
        %313 = vmatprep.subr.mxu0 0.0
        %314 = vmatpush1.msra.mxu0 0.0
        %315 = vmatprep.subr.mxu0 0.0
        %316 = vmatpush1.msra.mxu0 0.0
        %317 = vmatprep.subr.mxu0 0.0
        %318 = vmatpush1.msra.mxu0 0.0
        %319 = vmatprep.subr.mxu0 0.0
        %320 = vmatpush1.msra.mxu0 0.0
        %321 = vmatprep.subr.mxu0 0.0
        %322 = vmatpush1.msra.mxu0 0.0
        %323 = vmatprep.subr.mxu0 0.0
        %324 = vmatpush1.msra.mxu0 0.0
        %325 = vmatprep.subr.mxu0 0.0
        %326 = vmatpush1.msra.mxu0 0.0
        %327 = vmatprep.subr.mxu0 0.0
        %328 = vmatpush1.msra.mxu0 0.0
        %329 = vmatprep.subr.mxu0 0.0
        %330 = vmatpush1.msra.mxu0 0.0
        %331 = vmatprep.subr.mxu0 0.0
        %332 = vmatpush1.msra.mxu0 0.0
        %333 = vmatprep.subr.mxu0 0.0
        %334 = vmatpush1.msra.mxu0 0.0
        %335 = vmatprep.subr.mxu0 0.0
        %336 = vmatpush1.msra.mxu0 0.0
        %337 = vmatprep.subr.mxu0 0.0
        %338 = vmatpush1.msra.mxu0 0.0
        %339 = vmatprep.subr.mxu0 0.0
        %340 = vmatpush1.msra.mxu0 0.0
        %341 = vmatprep.mubr.f32.mxu0 0.0
        %342 = vmatmul.mubr.f32.gmra.mrb[0].mxu0 %v272
        %v343 = vpop.f32.mrb[0].mxu0
        %v344 = vadd.f32 0.0, %v343
        %v345 = vpop.f32.mrb[0].mxu0
        %346 = vdwg.mxu0
        %v348 = vsel %vm270, %v264, 0
        %v350 = vsel %vm274, %v258, 0
        %352 = vmatprep.subr.mxu0 0.0
        %353 = vmatpush1.msra.mxu0 %v350
        %354 = vmatprep.subr.mxu0 0.0
        %355 = vmatpush1.msra.mxu0 0.0
        %356 = vmatprep.subr.mxu0 0.0
        %357 = vmatpush1.msra.mxu0 0.0
        %358 = vmatprep.subr.mxu0 0.0
        %359 = vmatpush1.msra.mxu0 0.0
        %360 = vmatprep.subr.mxu0 0.0
        %361 = vmatpush1.msra.mxu0 0.0
        %362 = vmatprep.subr.mxu0 0.0
        %363 = vmatpush1.msra.mxu0 0.0
        %364 = vmatprep.subr.mxu0 0.0
        %365 = vmatpush1.msra.mxu0 0.0
        %366 = vmatprep.subr.mxu0 0.0
        %367 = vmatpush1.msra.mxu0 0.0
        %368 = vmatprep.subr.mxu0 0.0
        %369 = vmatpush1.msra.mxu0 0.0
        %370 = vmatprep.subr.mxu0 0.0
        %371 = vmatpush1.msra.mxu0 0.0
        %372 = vmatprep.subr.mxu0 0.0
        %373 = vmatpush1.msra.mxu0 0.0
        %374 = vmatprep.subr.mxu0 0.0
        %375 = vmatpush1.msra.mxu0 0.0
        %376 = vmatprep.subr.mxu0 0.0
        %377 = vmatpush1.msra.mxu0 0.0
        %378 = vmatprep.subr.mxu0 0.0
        %379 = vmatpush1.msra.mxu0 0.0
        %380 = vmatprep.subr.mxu0 0.0
        %381 = vmatpush1.msra.mxu0 0.0
        %382 = vmatprep.subr.mxu0 0.0
        %383 = vmatpush1.msra.mxu0 0.0
        %384 = vmatprep.subr.mxu0 0.0
        %385 = vmatpush1.msra.mxu0 0.0
        %386 = vmatprep.subr.mxu0 0.0
        %387 = vmatpush1.msra.mxu0 0.0
        %388 = vmatprep.subr.mxu0 0.0
        %389 = vmatpush1.msra.mxu0 0.0
        %390 = vmatprep.subr.mxu0 0.0
        %391 = vmatpush1.msra.mxu0 0.0
        %392 = vmatprep.subr.mxu0 0.0
        %393 = vmatpush1.msra.mxu0 0.0
        %394 = vmatprep.subr.mxu0 0.0
        %395 = vmatpush1.msra.mxu0 0.0
        %396 = vmatprep.subr.mxu0 0.0
        %397 = vmatpush1.msra.mxu0 0.0
        %398 = vmatprep.subr.mxu0 0.0
        %399 = vmatpush1.msra.mxu0 0.0
        %400 = vmatprep.subr.mxu0 0.0
        %401 = vmatpush1.msra.mxu0 0.0
        %402 = vmatprep.subr.mxu0 0.0
        %403 = vmatpush1.msra.mxu0 0.0
        %404 = vmatprep.subr.mxu0 0.0
        %405 = vmatpush1.msra.mxu0 0.0
        %406 = vmatprep.subr.mxu0 0.0
        %407 = vmatpush1.msra.mxu0 0.0
        %408 = vmatprep.subr.mxu0 0.0
        %409 = vmatpush1.msra.mxu0 0.0
        %410 = vmatprep.subr.mxu0 0.0
        %411 = vmatpush1.msra.mxu0 0.0
        %412 = vmatprep.subr.mxu0 0.0
        %413 = vmatpush1.msra.mxu0 0.0
        %414 = vmatprep.subr.mxu0 0.0
        %415 = vmatpush1.msra.mxu0 0.0
        %416 = vmatprep.mubr.f32.mxu0 0.0
        %417 = vmatmul.mubr.f32.gmra.mrb[0].mxu0 %v348
        %v418 = vpop.f32.mrb[0].mxu0
        %v419 = vadd.f32 %v344, %v418
        %v420 = vpop.f32.mrb[0].mxu0
        %421 = vdwg.mxu0
        %v422 = vld [vmem:[%s2] sm:$0xff]
        %424 = vset.pattern.permute.xlu0 0
        %425 = vperm.xlu0 %424, %v422
        %v426 = vpop.permute.xlu0 %425
        %v428 = vadd.f32 %v419, %v426
        %v429 = vxor.u32 %v428, 2147483648
        %v430 = vmul.f32 %v429, 1.442695
        %v431 = vpow.pop %v430
        %v432 = vadd.f32 %v431, 1.0
        %v433 = vrcp.pop %v432
        %v434 = vmul.f32 1.0, %v433
        %v436 = vrot.slane %v434, 4
        %v438 = vmul.f32 %v428, %v436
        %v439 = vld [vmem:[%s3] sm:$0xf]
        %v440 = vld [vmem:[%s4] sm:$0xf]
        %442 = vset.pattern.permute.xlu0 0
        %443 = vperm.xlu0 %442, %v440
        %v444 = vpop.permute.xlu0 %443
        %v447 = vsel %vm270, %v439, 0
        %v450 = vsel %vm274, %v438, 0
        %452 = vmatprep.subr.mxu0 0.0
        %453 = vmatpush1.msra.mxu0 %v450
        %454 = vmatprep.subr.mxu0 0.0
        %455 = vmatpush1.msra.mxu0 0.0
        %456 = vmatprep.subr.mxu0 0.0
        %457 = vmatpush1.msra.mxu0 0.0
        %458 = vmatprep.subr.mxu0 0.0
        %459 = vmatpush1.msra.mxu0 0.0
        %460 = vmatprep.subr.mxu0 0.0
        %461 = vmatpush1.msra.mxu0 0.0
        %462 = vmatprep.subr.mxu0 0.0
        %463 = vmatpush1.msra.mxu0 0.0
        %464 = vmatprep.subr.mxu0 0.0
        %465 = vmatpush1.msra.mxu0 0.0
        %466 = vmatprep.subr.mxu0 0.0
        %467 = vmatpush1.msra.mxu0 0.0
        %468 = vmatprep.subr.mxu0 0.0
        %469 = vmatpush1.msra.mxu0 0.0
        %470 = vmatprep.subr.mxu0 0.0
        %471 = vmatpush1.msra.mxu0 0.0
        %472 = vmatprep.subr.mxu0 0.0
        %473 = vmatpush1.msra.mxu0 0.0
        %474 = vmatprep.subr.mxu0 0.0
        %475 = vmatpush1.msra.mxu0 0.0
        %476 = vmatprep.subr.mxu0 0.0
        %477 = vmatpush1.msra.mxu0 0.0
        %478 = vmatprep.subr.mxu0 0.0
        %479 = vmatpush1.msra.mxu0 0.0
        %480 = vmatprep.subr.mxu0 0.0
        %481 = vmatpush1.msra.mxu0 0.0
        %482 = vmatprep.subr.mxu0 0.0
        %483 = vmatpush1.msra.mxu0 0.0
        %484 = vmatprep.subr.mxu0 0.0
        %485 = vmatpush1.msra.mxu0 0.0
        %486 = vmatprep.subr.mxu0 0.0
        %487 = vmatpush1.msra.mxu0 0.0
        %488 = vmatprep.subr.mxu0 0.0
        %489 = vmatpush1.msra.mxu0 0.0
        %490 = vmatprep.subr.mxu0 0.0
        %491 = vmatpush1.msra.mxu0 0.0
        %492 = vmatprep.subr.mxu0 0.0
        %493 = vmatpush1.msra.mxu0 0.0
        %494 = vmatprep.subr.mxu0 0.0
        %495 = vmatpush1.msra.mxu0 0.0
        %496 = vmatprep.subr.mxu0 0.0
        %497 = vmatpush1.msra.mxu0 0.0
        %498 = vmatprep.subr.mxu0 0.0
        %499 = vmatpush1.msra.mxu0 0.0
        %500 = vmatprep.subr.mxu0 0.0
        %501 = vmatpush1.msra.mxu0 0.0
        %502 = vmatprep.subr.mxu0 0.0
        %503 = vmatpush1.msra.mxu0 0.0
        %504 = vmatprep.subr.mxu0 0.0
        %505 = vmatpush1.msra.mxu0 0.0
        %506 = vmatprep.subr.mxu0 0.0
        %507 = vmatpush1.msra.mxu0 0.0
        %508 = vmatprep.subr.mxu0 0.0
        %509 = vmatpush1.msra.mxu0 0.0
        %510 = vmatprep.subr.mxu0 0.0
        %511 = vmatpush1.msra.mxu0 0.0
        %512 = vmatprep.subr.mxu0 0.0
        %513 = vmatpush1.msra.mxu0 0.0
        %514 = vmatprep.subr.mxu0 0.0
        %515 = vmatpush1.msra.mxu0 0.0
        %516 = vmatprep.mubr.f32.mxu0 0.0
        %517 = vmatmul.mubr.f32.gmra.mrb[0].mxu0 %v447
        %v518 = vpop.f32.mrb[0].mxu0
        %v519 = vadd.f32 %v444, %v518
        %v520 = vpop.f32.mrb[0].mxu0
        %521 = vdwg.mxu0
        %v522 = vadd.f32 %v519, %v245
        %vm523 = vcmask 125952
        %524 = vst.msk [vmem:[%s237] sm:$0xf] %vm523, %v522
        %s525 = sand.u32 %s153, 1
        %s526 = scalar_lea.sflag [#allocation4], %s525
        %s527 = sand.u32 %s153, 1
        %s528 = smul.addr %s527, 4
        %s529 = scalar_lea.vmem [#allocation3], %s528
        // Predicated region
        $region45: #{tpu_custom_call.1} parent=39 // pred_check
          %p530 = pneg %p163
        $region46: #{tpu_custom_call.1} parent=39 // pred_check_branch
          %532 = sbr.rel (%p530) target = $region48
        $region47: #{tpu_custom_call.1} parent=39 // pred_region
          %s534 = ssub.s32 64, 64
          %535 = vsyncadd %s526, %s534
          %s536 = sadd.s32 %s24, %s23
          %s537 = smul.addr %s536, 64
          %s538 = scalar_lea.hbm %s5, %s537
          %s540 = sshll.u32 %s529, 4
          %s541 = int_to_ptr.vmem [resolvable:$true] %s540
          %543 = dma.vmem_to_hbm [thread:$0]  %s541, 64, %s538, %s526
        $region48: #{tpu_custom_call.1} parent=39 // pred_fallthru
          _
      $region40: #{tpu_custom_call.1} parent=5 // pred_fallthru
        _
      %p544 = scmp.le.s32.totalorder 2, %s14
      // Predicated region
      $region49: #{tpu_custom_call.1} parent=5 // pred_check
        %p545 = pneg %p544
      $region50: #{tpu_custom_call.1} parent=5 // pred_check_branch
        %547 = sbr.rel (%p545) target = $region52
      $region51: #{tpu_custom_call.1} parent=5 // pred_region
        %s548 = ssub.s32 %s14, 2
        // Predicated region
        $region53: #{tpu_custom_call.1} parent=51 // pred_check
          %p549 = pneg %p169
        $region54: #{tpu_custom_call.1} parent=51 // pred_check_branch
          %551 = sbr.rel (%p549) target = $region56
        $region55: #{tpu_custom_call.1} parent=51 // pred_region
          %s552 = sand.u32 %s154, 1
          %s553 = scalar_lea.sflag [#allocation4], %s552
          %s554 = sand.u32 %s154, 1
          %s555 = smul.addr %s554, 4
          %s556 = scalar_lea.vmem [#allocation3], %s555
          %557 = dma.done %s553, 64
        $region56: #{tpu_custom_call.1} parent=51 // pred_fallthru
          _
      $region52: #{tpu_custom_call.1} parent=5 // pred_fallthru
        _
    $region6: #{tpu_custom_call.1} parent=1 // loop_footer
      %s18 = sadd.s32 1, %s14
    $region7: #{tpu_custom_call.1} parent=1 // loop_footer_branch
      %13 = sbr.rel target = $region3
    $region8: #{tpu_custom_call.1} parent=1 // loop_exit
      _
    %558 = vsyncpa [#allocation4], 1
    %s559 = scalar_lea.sflag [#allocation4], 1
    %560 = vsyncpa %s559, 1

</llo_original>
